<compile_context>
chip_gen: v7x
topology: tpu7x:2x2x1
jax: 0.10.0
libtpu: 0.0.40
codegen_flags: <defaults>
</compile_context>

<pallas_src>
import math
import numpy as np
import jax
import jax.numpy as jnp
from jax.experimental import pallas as pl
from jax.experimental.pallas import tpu as pltpu


def _pick_tile_t(num_tokens: int, bytes_per_token: int, budget: int = 8 << 20) -> int:
    """Largest power-of-two token tile (<=512) dividing T whose double-buffered
    per-tile footprint stays comfortably inside the scoped-VMEM budget."""
    fallback = num_tokens
    for cand in (512, 256, 128, 64, 32, 16, 8):
        if num_tokens % cand == 0:
            fallback = cand
            if 2 * cand * bytes_per_token + 12 * cand * cand <= budget:
                return cand
    return fallback


def _make_gate_kernel(num_tokens: int, tile_t: int, num_experts: int, capacity: int):
    T, TT, E, C = num_tokens, tile_t, num_experts, capacity
    f32_max = float(jnp.finfo(jnp.float32).max)

    def kernel(x_ref, w_ref, c_ref,
               combine_ref, dispatch_ref, laux_ref, splits_ref,
               proj_ref, count_ref, gsum_ref, tril_ref):
        i = pl.program_id(0)

        @pl.when(i == 0)
        def _init():
            # Centroid renorm, replicating the module:
            #   centroids.mul_(1.5 / ||centroids||); F.normalize(..., eps=1e-4)
            c = c_ref[...]                                            # (E, R)
            n1 = jnp.sqrt(jnp.sum(c * c, axis=1, keepdims=True))
            c1 = c * (1.5 / n1)
            n2 = jnp.sqrt(jnp.sum(c1 * c1, axis=1, keepdims=True))
            c_n = c1 / jnp.maximum(n2, 1e-4)
            # Fused projection: replaces the two skinny matmuls with a single
            # (TILE_T, D) @ (D, E) matmul per tile (K = model_dim feeds the MXU).
            proj_ref[...] = jnp.dot(w_ref[...], c_n.T,
                                    preferred_element_type=jnp.float32)  # (D, E)
            count_ref[...] = jnp.zeros_like(count_ref)
            gsum_ref[...] = jnp.zeros_like(gsum_ref)
            # Lower-triangular (inclusive) mask for the within-tile cumsum,
            # built once and reused by every tile.
            rows = jax.lax.broadcasted_iota(jnp.int32, (TT, TT), 0)
            cols = jax.lax.broadcasted_iota(jnp.int32, (TT, TT), 1)
            tril_ref[...] = (cols <= rows).astype(jnp.float32)

        # Cosine logits for this token tile.
        # TODO(synk): could cast x/proj to bf16 (f32 accumulate) for 2x MXU rate;
        # kept f32 for exact parity with the PyTorch float32 _cosine path.
        logits = jnp.dot(x_ref[...], proj_ref[...],
                         preferred_element_type=jnp.float32)             # (TT, E)

        # _make_finite: clamp non-finite entries to a large negative finite value.
        # abs(x) <= finfo.max is False for +/-inf and NaN, True for all finite x.
        # TODO(synk): PyTorch substitutes the *global* finite min; identical for
        # finite inputs (the normal case), avoids a cross-tile reduction here.
        finite = jnp.abs(logits) <= jnp.float32(f32_max)
        logits = jnp.where(finite, logits, jnp.float32(-1e30))

        # softmax over experts (greedy_assignment)
        m = jnp.max(logits, axis=1, keepdims=True)
        ex = jnp.exp(logits - m)
        gates = ex / jnp.sum(ex, axis=1, keepdims=True)                  # (TT, E)

        # argmax over experts (first occurrence on ties). Done on logits: softmax
        # is monotone, so this matches torch.argmax(gates).
        eids = jax.lax.broadcasted_iota(jnp.int32, (TT, E), 1)
        idx = jnp.min(jnp.where(logits == m, eids, E), axis=1, keepdims=True)  # (TT,1)
        mask1 = (eids == idx).astype(jnp.float32)                        # (TT, E)

        # Token cumsum: bounded (TT, TT) tril matmul (MXU) for the within-tile
        # inclusive cumsum + per-expert running-count carry across tiles.
        csum = jnp.dot(tril_ref[...], mask1,
                       preferred_element_type=jnp.float32)               # (TT, E)
        prev_counts = count_ref[...]                                     # (1, E)
        locations1 = csum + prev_counts - 1.0                            # (TT, E)

        count_ref[...] = prev_counts + jnp.sum(mask1, axis=0, keepdims=True)
        gsum_ref[...] = gsum_ref[...] + jnp.sum(gates, axis=0, keepdims=True)

        gates1_s = 1.5 * jnp.sum(gates * mask1, axis=1, keepdims=True)   # (TT, 1)

        # Capacity masking + lane-dense (TT, E*C) combine / int8 dispatch outputs.
        loc_s = jnp.sum(locations1 * mask1, axis=1, keepdims=True)       # (TT, 1)
        within = loc_s < float(C)                                        # (TT, 1)
        flat_target = idx * C + loc_s.astype(jnp.int32)                  # (TT, 1)
        col = jax.lax.broadcasted_iota(jnp.int32, (TT, E * C), 1)
        hit = jnp.logical_and(col == flat_target, within)                # (TT, E*C)
        combine = jnp.where(hit, gates1_s, 0.0)                          # (TT, E*C)
        combine_ref[...] = combine
        # dispatch_mask = combine.bool(); emitted in-kernel as int8 (1 B/elt).
        dispatch_ref[...] = (combine != 0.0).astype(jnp.int8)

        # Finalize cross-tile reductions on the last grid step.
        @pl.when(i == pl.num_programs(0) - 1)
        def _final():
            total_counts = count_ref[...]                                # (1, E)
            me = gsum_ref[...] * (1.0 / float(T))
            ce = total_counts * (1.0 / float(T))
            # mean(me*ce) * E * E == sum(me*ce) * E
            laux_ref[...] = jnp.sum(me * ce, keepdims=True) * float(E)   # (1, 1)
            splits_ref[...] = total_counts.astype(jnp.int32)

    return kernel


def top1_gate_pallas(x, w_red_t, centroids, capacity):
    T, D = x.shape
    E, R = centroids.shape
    C = int(capacity)

    bytes_per_token = 4 * D + 5 * E * C          # f32 x + f32 combine + i8 dispatch
    tile_t = _pick_tile_t(T, bytes_per_token)
    n_tiles = T // tile_t

    kernel = _make_gate_kernel(T, tile_t, E, C)

    grid_spec = pltpu.PrefetchScalarGridSpec(
        num_scalar_prefetch=0,
        grid=(n_tiles,),
        in_specs=[
            pl.BlockSpec((tile_t, D), lambda i: (i, 0)),     # x token tile
            pl.BlockSpec((D, R), lambda i: (0, 0)),          # dim-reduction weight (resident)
            pl.BlockSpec((E, R), lambda i: (0, 0)),          # expert centroids (resident)
        ],
        out_specs=(
            pl.BlockSpec((tile_t, E * C), lambda i: (i, 0)),  # combine (lane-dense)
            pl.BlockSpec((tile_t, E * C), lambda i: (i, 0)),  # dispatch (int8)
            pl.BlockSpec((1, 1), lambda i: (0, 0)),           # l_aux
            pl.BlockSpec((1, E), lambda i: (0, 0)),           # expert token counts
        ),
        scratch_shapes=[
            pltpu.VMEM((D, E), jnp.float32),          # fused projection  W_red^T @ c_n^T
            pltpu.VMEM((1, E), jnp.float32),          # running per-expert counts (cumsum carry)
            pltpu.VMEM((1, E), jnp.float32),          # running sum of gates (for l_aux)
            pltpu.VMEM((tile_t, tile_t), jnp.float32),  # tril mask for within-tile cumsum
        ],
    )

    combine_flat, dispatch_flat, l_aux, splits = pl.pallas_call(
        kernel,
        grid_spec=grid_spec,
        out_shape=(
            jax.ShapeDtypeStruct((T, E * C), jnp.float32),   # combine1_sec (flat)
            jax.ShapeDtypeStruct((T, E * C), jnp.int8),      # dispatch mask (flat)
            jax.ShapeDtypeStruct((1, 1), jnp.float32),       # l_aux
            jax.ShapeDtypeStruct((1, E), jnp.int32),         # expert token counts
        ),
        compiler_params=pltpu.CompilerParams(
            dimension_semantics=("arbitrary",),              # cumsum carry serializes tokens
            vmem_limit_bytes=32 * 1024 * 1024,
        ),
        cost_estimate=pl.CostEstimate(
            flops=2 * T * D * E + 2 * T * tile_t * E + 2 * D * R * E,
            transcendentals=T * E,
            bytes_accessed=4 * T * D + 4 * D * R + 4 * E * R
                           + 5 * T * E * C + 4 * E + 4,
        ),
    )(x, w_red_t, centroids)

    combine = combine_flat.reshape(T, E, C)
    # int8 -> bool is a cheap 1-byte elementwise view; avoids re-reading the f32 combine.
    dispatch_mask = dispatch_flat.reshape(T, E, C).astype(jnp.bool_)
    l_aux_scalar = l_aux[0, 0]
    metadata = {
        "l_aux": l_aux_scalar,
        "expert_adress_tokens_count": splits[0],
    }
    return l_aux_scalar, combine, dispatch_mask, metadata


def reference_jax(x, w_red_t, centroids, capacity):
    """Pure-JAX reference mirroring the PyTorch forward (eval mode)."""
    E = centroids.shape[0]
    xr = x @ w_red_t
    norm = jnp.linalg.norm(centroids, axis=1, keepdims=True)
    c2 = centroids * (1.5 / norm)
    cn = c2 / jnp.maximum(jnp.linalg.norm(c2, axis=1, keepdims=True), 1e-4)
    logits = xr @ cn.T
    gates = jax.nn.softmax(logits, axis=1)
    idx = jnp.argmax(gates, axis=1)
    mask1 = jax.nn.one_hot(idx, E, dtype=jnp.float32)
    splits = jnp.sum(mask1, axis=0).astype(jnp.int32)
    gates1_s = 1.5 * jnp.sum(gates * mask1, axis=1)
    locations1 = jnp.cumsum(mask1, axis=0) - 1.0
    me = jnp.mean(gates, axis=0)
    ce = jnp.mean(mask1, axis=0)
    l_aux = jnp.mean(me * ce) * E * E
    mask1c = mask1 * (locations1 < capacity)
    locations1_s = jnp.sum(locations1 * mask1c, axis=1)
    gates1 = gates1_s[:, None] * mask1c
    loc_sc = jax.nn.one_hot(locations1_s.astype(jnp.int32), capacity, dtype=jnp.float32)
    combine = gates1[:, :, None] * loc_sc[:, None, :]
    return combine, l_aux, splits


if __name__ == "__main__":
    # Small shapes: 8 tokens, model_dim 32, 8 experts, xMoE reduced dim 4.
    T, D, E, R = 8, 32, 8, 4
    # eval_mode=True, moe_eval_capacity_token_fraction=1.0 -> capacity = T
    capacity = int(math.ceil(1.0 * T))

    key = jax.random.PRNGKey(0)
    kx, kw, kc = jax.random.split(key, 3)

    # input tokens
    x = jax.random.normal(kx, (T, D), dtype=jnp.float32)

    # dim_reduction = Linear(D, 4, bias=False); default kaiming-uniform-ish init
    bound = 1.0 / math.sqrt(D)
    w_red = jax.random.uniform(kw, (R, D), minval=-bound, maxval=bound,
                               dtype=jnp.float32)          # torch weight layout (out, in)
    w_red_t = w_red.T                                       # (D, R) for x @ W^T

    # expert_centroids: orthogonal init with gain 0.32 (deterministic, host-side QR)
    a = np.asarray(jax.random.normal(kc, (E, R), dtype=jnp.float32), dtype=np.float64)
    q, r = np.linalg.qr(a)
    q = q * np.sign(np.diag(r))[None, :]
    centroids = jnp.asarray(0.32 * q, dtype=jnp.float32)    # (E, R)

    l_aux, combine, dispatch_mask, metadata = jax.block_until_ready(
        top1_gate_pallas(x, w_red_t, centroids, capacity)
    )

    # correctness check vs. pure-JAX reference
    combine_ref, l_aux_ref, splits_ref = reference_jax(x, w_red_t, centroids, capacity)
    assert combine.shape == (T, E, capacity)
    assert dispatch_mask.dtype == jnp.bool_
    np.testing.assert_allclose(np.asarray(combine), np.asarray(combine_ref),
                               rtol=1e-5, atol=1e-5)
    np.testing.assert_array_equal(np.asarray(dispatch_mask),
                                  np.asarray(combine_ref) != 0.0)
    np.testing.assert_allclose(float(l_aux), float(l_aux_ref), rtol=1e-5, atol=1e-6)
    np.testing.assert_array_equal(
        np.asarray(metadata["expert_adress_tokens_count"]), np.asarray(splits_ref))

    print("KERNEL_OK")
</pallas_src>

<mosaic_0001>
module attributes {stable_mosaic.version = 11 : i64} {
  func.func @kernel(%arg0: i32, %arg1: memref<8x32xf32, #tpu.memory_space<vmem>>, %arg2: memref<32x4xf32, #tpu.memory_space<vmem>>, %arg3: memref<8x4xf32, #tpu.memory_space<vmem>>, %arg4: memref<8x64xf32, #tpu.memory_space<vmem>>, %arg5: memref<8x64xi8, #tpu.memory_space<vmem>>, %arg6: memref<1x1xf32, #tpu.memory_space<vmem>>, %arg7: memref<1x8xi32, #tpu.memory_space<vmem>>, %arg8: memref<32x8xf32, #tpu.memory_space<vmem>>, %arg9: memref<1x8xf32, #tpu.memory_space<vmem>>, %arg10: memref<1x8xf32, #tpu.memory_space<vmem>>, %arg11: memref<8x8xf32, #tpu.memory_space<vmem>>) attributes {dimension_semantics = [#tpu.dimension_semantics<arbitrary>], iteration_bounds = array<i64: 1>, scalar_prefetch = 0 : i64, scratch_operands = 4 : i64, tpu.core_type = #tpu.core_type<tc>, window_params = [{transform_indices = @transform_0, window_bounds = array<i64: 8, 32>}, {pipeline_mode = #tpu.pipeline_mode<synchronous>, transform_indices = @transform_1, window_bounds = array<i64: 32, 4>}, {pipeline_mode = #tpu.pipeline_mode<synchronous>, transform_indices = @transform_2, window_bounds = array<i64: 8, 4>}, {transform_indices = @transform_3, window_bounds = array<i64: 8, 64>}, {transform_indices = @transform_4, window_bounds = array<i64: 8, 64>}, {pipeline_mode = #tpu.pipeline_mode<synchronous>, transform_indices = @transform_5, window_bounds = array<i64: 1, 1>}, {pipeline_mode = #tpu.pipeline_mode<synchronous>, transform_indices = @transform_6, window_bounds = array<i64: 1, 8>}]} {
    %c0_i32 = arith.constant 0 : i32
    %0 = arith.cmpi eq, %arg0, %c0_i32 : i32
    %1 = arith.extui %0 : i1 to i32
    %c0_i32_0 = arith.constant 0 : i32
    %2 = arith.cmpi ne, %1, %c0_i32_0 : i32
    scf.if %2 {
      %c0_36 = arith.constant 0 : index
      %c0_37 = arith.constant 0 : index
      %78 = vector.load %arg3[%c0_36, %c0_37] : memref<8x4xf32, #tpu.memory_space<vmem>>, vector<8x4xf32>
      %79 = arith.mulf %78, %78 : vector<8x4xf32>
      %cst_38 = arith.constant dense<0.000000e+00> : vector<8xf32>
      %80 = vector.multi_reduction <add>, %79, %cst_38 [1] : vector<8x4xf32> to vector<8xf32>
      %81 = vector.shape_cast %80 : vector<8xf32> to vector<8x1xf32>
      %82 = math.sqrt %81 : vector<8x1xf32>
      %cst_39 = arith.constant 1.500000e+00 : f32
      %83 = vector.broadcast %cst_39 : f32 to vector<8x1xf32>
      %84 = arith.divf %83, %82 : vector<8x1xf32>
      %85 = vector.broadcast %84 : vector<8x1xf32> to vector<8x4xf32>
      %86 = arith.mulf %78, %85 : vector<8x4xf32>
      %87 = arith.mulf %86, %86 : vector<8x4xf32>
      %cst_40 = arith.constant dense<0.000000e+00> : vector<8xf32>
      %88 = vector.multi_reduction <add>, %87, %cst_40 [1] : vector<8x4xf32> to vector<8xf32>
      %89 = vector.shape_cast %88 : vector<8xf32> to vector<8x1xf32>
      %90 = math.sqrt %89 : vector<8x1xf32>
      %cst_41 = arith.constant 9.99999974E-5 : f32
      %91 = vector.broadcast %cst_41 : f32 to vector<8x1xf32>
      %92 = arith.maximumf %90, %91 : vector<8x1xf32>
      %93 = vector.broadcast %92 : vector<8x1xf32> to vector<8x4xf32>
      %94 = arith.divf %86, %93 : vector<8x4xf32>
      %c0_42 = arith.constant 0 : index
      %c0_43 = arith.constant 0 : index
      %95 = vector.load %arg2[%c0_42, %c0_43] : memref<32x4xf32, #tpu.memory_space<vmem>>, vector<32x4xf32>
      %96 = tpu.transpose %94, [1, 0] : vector<8x4xf32> -> vector<4x8xf32>
      %cst_44 = arith.constant dense<0.000000e+00> : vector<32x8xf32>
      %97 = tpu.matmul %95, %96, %cst_44 {dimension_numbers = #tpu.dot_dimension_numbers<[1], [0], [0], [1], [0, 0, 1, 1], [], []>} : vector<32x4xf32>, vector<4x8xf32>, vector<32x8xf32> -> vector<32x8xf32>
      %c0_45 = arith.constant 0 : index
      %c0_46 = arith.constant 0 : index
      %98 = vector.load %arg8[%c0_45, %c0_46] : memref<32x8xf32, #tpu.memory_space<vmem>>, vector<32x8xf32>
      tpu.vector_store %arg8[%c0_45, %c0_46], %97 {strides = array<i32>} : memref<32x8xf32, #tpu.memory_space<vmem>>, vector<32x8xf32>,
      %cst_47 = arith.constant 0.000000e+00 : f32
      %99 = vector.broadcast %cst_47 : f32 to vector<1x8xf32>
      %c0_48 = arith.constant 0 : index
      %c0_49 = arith.constant 0 : index
      %100 = vector.load %arg9[%c0_48, %c0_49] : memref<1x8xf32, #tpu.memory_space<vmem>>, vector<1x8xf32>
      tpu.vector_store %arg9[%c0_48, %c0_49], %99 {strides = array<i32>} : memref<1x8xf32, #tpu.memory_space<vmem>>, vector<1x8xf32>,
      %cst_50 = arith.constant 0.000000e+00 : f32
      %101 = vector.broadcast %cst_50 : f32 to vector<1x8xf32>
      %c0_51 = arith.constant 0 : index
      %c0_52 = arith.constant 0 : index
      %102 = vector.load %arg10[%c0_51, %c0_52] : memref<1x8xf32, #tpu.memory_space<vmem>>, vector<1x8xf32>
      tpu.vector_store %arg10[%c0_51, %c0_52], %101 {strides = array<i32>} : memref<1x8xf32, #tpu.memory_space<vmem>>, vector<1x8xf32>,
      %103 = tpu.iota {dimensions = array<i32: 0>} : vector<8x8xi32>
      %104 = tpu.iota {dimensions = array<i32: 1>} : vector<8x8xi32>
      %105 = arith.cmpi sle, %104, %103 : vector<8x8xi32>
      %106 = arith.extui %105 : vector<8x8xi1> to vector<8x8xi32>
      %107 = arith.sitofp %106 : vector<8x8xi32> to vector<8x8xf32>
      %c0_53 = arith.constant 0 : index
      %c0_54 = arith.constant 0 : index
      %108 = vector.load %arg11[%c0_53, %c0_54] : memref<8x8xf32, #tpu.memory_space<vmem>>, vector<8x8xf32>
      tpu.vector_store %arg11[%c0_53, %c0_54], %107 {strides = array<i32>} : memref<8x8xf32, #tpu.memory_space<vmem>>, vector<8x8xf32>,
    } else {
    }
    %c0 = arith.constant 0 : index
    %c0_1 = arith.constant 0 : index
    %3 = vector.load %arg1[%c0, %c0_1] : memref<8x32xf32, #tpu.memory_space<vmem>>, vector<8x32xf32>
    %c0_2 = arith.constant 0 : index
    %c0_3 = arith.constant 0 : index
    %4 = vector.load %arg8[%c0_2, %c0_3] : memref<32x8xf32, #tpu.memory_space<vmem>>, vector<32x8xf32>
    %cst = arith.constant dense<0.000000e+00> : vector<8x8xf32>
    %5 = tpu.matmul %3, %4, %cst {dimension_numbers = #tpu.dot_dimension_numbers<[1], [0], [0], [1], [0, 0, 1, 1], [], []>} : vector<8x32xf32>, vector<32x8xf32>, vector<8x8xf32> -> vector<8x8xf32>
    %6 = math.absf %5 : vector<8x8xf32>
    %cst_4 = arith.constant 3.40282347E+38 : f32
    %7 = vector.broadcast %cst_4 : f32 to vector<8x8xf32>
    %8 = arith.cmpf ole, %6, %7 : vector<8x8xf32>
    %cst_5 = arith.constant -1.000000e+30 : f32
    %9 = vector.broadcast %cst_5 : f32 to vector<8x8xf32>
    %10 = arith.select %8, %5, %9 : vector<8x8xi1>, vector<8x8xf32>
    %cst_6 = arith.constant dense<0xFF800000> : vector<8xf32>
    %11 = vector.multi_reduction <maximumf>, %10, %cst_6 [1] : vector<8x8xf32> to vector<8xf32>
    %12 = vector.shape_cast %11 : vector<8xf32> to vector<8x1xf32>
    %13 = vector.broadcast %12 : vector<8x1xf32> to vector<8x8xf32>
    %14 = arith.subf %10, %13 : vector<8x8xf32>
    %15 = math.exp %14 : vector<8x8xf32>
    %cst_7 = arith.constant dense<0.000000e+00> : vector<8xf32>
    %16 = vector.multi_reduction <add>, %15, %cst_7 [1] : vector<8x8xf32> to vector<8xf32>
    %17 = vector.shape_cast %16 : vector<8xf32> to vector<8x1xf32>
    %18 = vector.broadcast %17 : vector<8x1xf32> to vector<8x8xf32>
    %19 = arith.divf %15, %18 : vector<8x8xf32>
    %20 = tpu.iota {dimensions = array<i32: 1>} : vector<8x8xi32>
    %21 = vector.broadcast %12 : vector<8x1xf32> to vector<8x8xf32>
    %22 = arith.cmpf oeq, %10, %21 : vector<8x8xf32>
    %c8_i32 = arith.constant 8 : i32
    %23 = vector.broadcast %c8_i32 : i32 to vector<8x8xi32>
    %24 = arith.select %22, %20, %23 : vector<8x8xi1>, vector<8x8xi32>
    %cst_8 = arith.constant dense<2147483647> : vector<8xi32>
    %25 = vector.multi_reduction <minsi>, %24, %cst_8 [1] : vector<8x8xi32> to vector<8xi32>
    %26 = vector.shape_cast %25 : vector<8xi32> to vector<8x1xi32>
    %27 = vector.broadcast %26 : vector<8x1xi32> to vector<8x8xi32>
    %28 = arith.cmpi eq, %20, %27 : vector<8x8xi32>
    %29 = arith.extui %28 : vector<8x8xi1> to vector<8x8xi32>
    %30 = arith.sitofp %29 : vector<8x8xi32> to vector<8x8xf32>
    %c0_9 = arith.constant 0 : index
    %c0_10 = arith.constant 0 : index
    %31 = vector.load %arg11[%c0_9, %c0_10] : memref<8x8xf32, #tpu.memory_space<vmem>>, vector<8x8xf32>
    %cst_11 = arith.constant dense<0.000000e+00> : vector<8x8xf32>
    %32 = tpu.matmul %31, %30, %cst_11 {dimension_numbers = #tpu.dot_dimension_numbers<[1], [0], [0], [1], [0, 0, 1, 1], [], []>} : vector<8x8xf32>, vector<8x8xf32>, vector<8x8xf32> -> vector<8x8xf32>
    %c0_12 = arith.constant 0 : index
    %c0_13 = arith.constant 0 : index
    %33 = vector.load %arg9[%c0_12, %c0_13] : memref<1x8xf32, #tpu.memory_space<vmem>>, vector<1x8xf32>
    %34 = vector.broadcast %33 : vector<1x8xf32> to vector<8x8xf32>
    %35 = arith.addf %32, %34 : vector<8x8xf32>
    %cst_14 = arith.constant 1.000000e+00 : f32
    %36 = vector.broadcast %cst_14 : f32 to vector<8x8xf32>
    %37 = arith.subf %35, %36 : vector<8x8xf32>
    %cst_15 = arith.constant dense<0.000000e+00> : vector<8xf32>
    %38 = vector.multi_reduction <add>, %30, %cst_15 [0] : vector<8x8xf32> to vector<8xf32>
    %39 = vector.shape_cast %38 : vector<8xf32> to vector<1x8xf32>
    %40 = arith.addf %33, %39 : vector<1x8xf32>
    %c0_16 = arith.constant 0 : index
    %c0_17 = arith.constant 0 : index
    %41 = vector.load %arg9[%c0_16, %c0_17] : memref<1x8xf32, #tpu.memory_space<vmem>>, vector<1x8xf32>
    tpu.vector_store %arg9[%c0_16, %c0_17], %40 {strides = array<i32>} : memref<1x8xf32, #tpu.memory_space<vmem>>, vector<1x8xf32>,
    %c0_18 = arith.constant 0 : index
    %c0_19 = arith.constant 0 : index
    %42 = vector.load %arg10[%c0_18, %c0_19] : memref<1x8xf32, #tpu.memory_space<vmem>>, vector<1x8xf32>
    %cst_20 = arith.constant dense<0.000000e+00> : vector<8xf32>
    %43 = vector.multi_reduction <add>, %19, %cst_20 [0] : vector<8x8xf32> to vector<8xf32>
    %44 = vector.shape_cast %43 : vector<8xf32> to vector<1x8xf32>
    %45 = arith.addf %42, %44 : vector<1x8xf32>
    %c0_21 = arith.constant 0 : index
    %c0_22 = arith.constant 0 : index
    %46 = vector.load %arg10[%c0_21, %c0_22] : memref<1x8xf32, #tpu.memory_space<vmem>>, vector<1x8xf32>
    tpu.vector_store %arg10[%c0_21, %c0_22], %45 {strides = array<i32>} : memref<1x8xf32, #tpu.memory_space<vmem>>, vector<1x8xf32>,
    %47 = arith.mulf %19, %30 : vector<8x8xf32>
    %cst_23 = arith.constant dense<0.000000e+00> : vector<8xf32>
    %48 = vector.multi_reduction <add>, %47, %cst_23 [1] : vector<8x8xf32> to vector<8xf32>
    %49 = vector.shape_cast %48 : vector<8xf32> to vector<8x1xf32>
    %cst_24 = arith.constant 1.500000e+00 : f32
    %50 = vector.broadcast %cst_24 : f32 to vector<8x1xf32>
    %51 = arith.mulf %50, %49 : vector<8x1xf32>
    %52 = arith.mulf %37, %30 : vector<8x8xf32>
    %cst_25 = arith.constant dense<0.000000e+00> : vector<8xf32>
    %53 = vector.multi_reduction <add>, %52, %cst_25 [1] : vector<8x8xf32> to vector<8xf32>
    %54 = vector.shape_cast %53 : vector<8xf32> to vector<8x1xf32>
    %cst_26 = arith.constant 8.000000e+00 : f32
    %55 = vector.broadcast %cst_26 : f32 to vector<8x1xf32>
    %56 = arith.cmpf olt, %54, %55 : vector<8x1xf32>
    %c8_i32_27 = arith.constant 8 : i32
    %57 = vector.broadcast %c8_i32_27 : i32 to vector<8x1xi32>
    %58 = arith.muli %26, %57 : vector<8x1xi32>
    %59 = arith.fptosi %54 : vector<8x1xf32> to vector<8x1xi32>
    %60 = arith.addi %58, %59 : vector<8x1xi32>
    %61 = tpu.iota {dimensions = array<i32: 1>} : vector<8x64xi32>
    %62 = vector.broadcast %60 : vector<8x1xi32> to vector<8x64xi32>
    %63 = arith.cmpi eq, %61, %62 : vector<8x64xi32>
    %64 = vector.broadcast %56 : vector<8x1xi1> to vector<8x64xi1>
    %65 = arith.andi %63, %64 : vector<8x64xi1>
    %cst_28 = arith.constant 0.000000e+00 : f32
    %66 = vector.shape_cast %51 : vector<8x1xf32> to vector<8x1xf32>
    %67 = vector.broadcast %66 : vector<8x1xf32> to vector<8x64xf32>
    %68 = vector.broadcast %cst_28 : f32 to vector<8x64xf32>
    %69 = arith.select %65, %67, %68 : vector<8x64xi1>, vector<8x64xf32>
    %c0_29 = arith.constant 0 : index
    %c0_30 = arith.constant 0 : index
    %70 = vector.load %arg4[%c0_29, %c0_30] : memref<8x64xf32, #tpu.memory_space<vmem>>, vector<8x64xf32>
    tpu.vector_store %arg4[%c0_29, %c0_30], %69 {strides = array<i32>} : memref<8x64xf32, #tpu.memory_space<vmem>>, vector<8x64xf32>,
    %cst_31 = arith.constant 0.000000e+00 : f32
    %71 = vector.broadcast %cst_31 : f32 to vector<8x64xf32>
    %72 = arith.cmpf one, %69, %71 : vector<8x64xf32>
    %73 = arith.extui %72 : vector<8x64xi1> to vector<8x64xi8>
    %c0_32 = arith.constant 0 : index
    %c0_33 = arith.constant 0 : index
    %74 = vector.load %arg5[%c0_32, %c0_33] : memref<8x64xi8, #tpu.memory_space<vmem>>, vector<8x64xi8>
    tpu.vector_store %arg5[%c0_32, %c0_33], %73 {strides = array<i32>} : memref<8x64xi8, #tpu.memory_space<vmem>>, vector<8x64xi8>,
    %c0_i32_34 = arith.constant 0 : i32
    %75 = arith.cmpi eq, %arg0, %c0_i32_34 : i32
    %76 = arith.extui %75 : i1 to i32
    %c0_i32_35 = arith.constant 0 : i32
    %77 = arith.cmpi ne, %76, %c0_i32_35 : i32
    scf.if %77 {
      %c0_36 = arith.constant 0 : index
      %c0_37 = arith.constant 0 : index
      %78 = vector.load %arg9[%c0_36, %c0_37] : memref<1x8xf32, #tpu.memory_space<vmem>>, vector<1x8xf32>
      %c0_38 = arith.constant 0 : index
      %c0_39 = arith.constant 0 : index
      %79 = vector.load %arg10[%c0_38, %c0_39] : memref<1x8xf32, #tpu.memory_space<vmem>>, vector<1x8xf32>
      %cst_40 = arith.constant 1.250000e-01 : f32
      %80 = vector.broadcast %cst_40 : f32 to vector<1x8xf32>
      %81 = arith.mulf %79, %80 : vector<1x8xf32>
      %cst_41 = arith.constant 1.250000e-01 : f32
      %82 = vector.broadcast %cst_41 : f32 to vector<1x8xf32>
      %83 = arith.mulf %78, %82 : vector<1x8xf32>
      %84 = arith.mulf %81, %83 : vector<1x8xf32>
      %85 = vector.shape_cast %84 : vector<1x8xf32> to vector<1x1x8xf32>
      %cst_42 = arith.constant dense<0.000000e+00> : vector<1xf32>
      %86 = vector.multi_reduction <add>, %85, %cst_42 [1, 2] : vector<1x1x8xf32> to vector<1xf32>
      %87 = vector.shape_cast %86 : vector<1xf32> to vector<1x1x1xf32>
      %88 = vector.extract %87[0, 0, 0] : f32 from vector<1x1x1xf32>
      %89 = vector.broadcast %88 : f32 to vector<1x1xf32>
      %cst_43 = arith.constant 8.000000e+00 : f32
      %90 = vector.broadcast %cst_43 : f32 to vector<1x1xf32>
      %91 = arith.mulf %89, %90 : vector<1x1xf32>
      %c0_44 = arith.constant 0 : index
      %c0_45 = arith.constant 0 : index
      %92 = vector.load %arg6[%c0_44, %c0_45] : memref<1x1xf32, #tpu.memory_space<vmem>>, vector<1x1xf32>
      tpu.vector_store %arg6[%c0_44, %c0_45], %91 {strides = array<i32>} : memref<1x1xf32, #tpu.memory_space<vmem>>, vector<1x1xf32>,
      %93 = arith.fptosi %78 : vector<1x8xf32> to vector<1x8xi32>
      %c0_46 = arith.constant 0 : index
      %c0_47 = arith.constant 0 : index
      %94 = vector.load %arg7[%c0_46, %c0_47] : memref<1x8xi32, #tpu.memory_space<vmem>>, vector<1x8xi32>
      tpu.vector_store %arg7[%c0_46, %c0_47], %93 {strides = array<i32>} : memref<1x8xi32, #tpu.memory_space<vmem>>, vector<1x8xi32>,
    } else {
    }
    return
  }
  func.func @transform_0(%arg0: i32) -> (i32, i32) {
    %c0_i32 = arith.constant 0 : i32
    %c0_i32_0 = arith.constant 0 : i32
    return %arg0, %c0_i32 : i32, i32
  }
  func.func @transform_1(%arg0: i32) -> (i32, i32) {
    %c0_i32 = arith.constant 0 : i32
    %c0_i32_0 = arith.constant 0 : i32
    %c0_i32_1 = arith.constant 0 : i32
    return %c0_i32, %c0_i32_0 : i32, i32
  }
  func.func @transform_2(%arg0: i32) -> (i32, i32) {
    %c0_i32 = arith.constant 0 : i32
    %c0_i32_0 = arith.constant 0 : i32
    %c0_i32_1 = arith.constant 0 : i32
    return %c0_i32, %c0_i32_0 : i32, i32
  }
  func.func @transform_3(%arg0: i32) -> (i32, i32) {
    %c0_i32 = arith.constant 0 : i32
    %c0_i32_0 = arith.constant 0 : i32
    return %arg0, %c0_i32 : i32, i32
  }
  func.func @transform_4(%arg0: i32) -> (i32, i32) {
    %c0_i32 = arith.constant 0 : i32
    %c0_i32_0 = arith.constant 0 : i32
    return %arg0, %c0_i32 : i32, i32
  }
  func.func @transform_5(%arg0: i32) -> (i32, i32) {
    %c0_i32 = arith.constant 0 : i32
    %c0_i32_0 = arith.constant 0 : i32
    %c0_i32_1 = arith.constant 0 : i32
    return %c0_i32, %c0_i32_0 : i32, i32
  }
  func.func @transform_6(%arg0: i32) -> (i32, i32) {
    %c0_i32 = arith.constant 0 : i32
    %c0_i32_0 = arith.constant 0 : i32
    %c0_i32_1 = arith.constant 0 : i32
    return %c0_i32, %c0_i32_0 : i32, i32
  }
}

</mosaic_0001>

<llo_original>
// kernel: tpu_custom_call.1
$region0: #{tpu_custom_call.1}
  #allocation0 [shape = 'u32[]', space=smem, size = 0x4, offset = 0x4, fixed_abs, tag = 'smem constant byte address 0x4 - core index']
  #allocation1 [shape = 'u32[144,128]{1,0:T(1,128)}', space=vmem, size = 0x12000, scoped, tag = 'internal scratch']
  #allocation2 [shape = 'f32[32,8]{1,0:T(8,128)}', space=vmem, size = 0x4000, scoped, tag = 'scratch operand']
  #allocation3 [shape = 'f32[1,8]{1,0:T(1,128)}', space=vmem, size = 0x200, scoped, tag = 'scratch operand']
  #allocation4 [shape = 'f32[1,8]{1,0:T(1,128)}', space=vmem, size = 0x200, scoped, tag = 'scratch operand']
  #allocation5 [shape = 'f32[8,8]{1,0:T(8,128)}', space=vmem, size = 0x1000, scoped, tag = 'scratch operand']
  %s0 = inlined_call_operand.vmem [shape: f32[8,32], index: 0, kind: input, shape index: {}]
  %s1 = inlined_call_operand.vmem [shape: f32[32,4], index: 1, kind: input, shape index: {}]
  %s2 = inlined_call_operand.vmem [shape: f32[8,4], index: 2, kind: input, shape index: {}]
  %s3 = inlined_call_operand.hbm [shape: f32[8,64], index: 3, kind: output, shape index: {0}]
  %s4 = inlined_call_operand.hbm [shape: s8[8,64], index: 4, kind: output, shape index: {1}]
  %s5 = inlined_call_operand.hbm [shape: f32[1,1], index: 5, kind: output, shape index: {2}]
  %s6 = inlined_call_operand.hbm [shape: s32[1,8], index: 6, kind: output, shape index: {3}]
  %7 = xla_tuple %s3, %s4, %s5, %s6
  %s8 = sld [smem:[#allocation0]]
  $region54: #{tpu_custom_call.1} parent=0
    _
  %s10 = ssub.s32 1, %s8
  %s11 = scalar_select 0, %s10, %s8
  $region1: #{tpu_custom_call.1} parent=0
    #allocation6 [shape = 'u8[4096]{0}', space=vmem, size = 0x1000, scoped, tag = 'output window, operand 0, single buffered']
    #allocation7 [shape = 's32[1]{0}', space=sflag, size = 0x4, scoped, tag = 'scoped memory for tpu_custom_call.1']
    #allocation8 [shape = 'u8[1024]{0}', space=vmem, size = 0x400, scoped, tag = 'output window, operand 1, single buffered']
    #allocation9 [shape = 's32[1]{0}', space=sflag, size = 0x4, scoped, tag = 'scoped memory for tpu_custom_call.1']
    #allocation10 [shape = 'u8[512]{0}', space=vmem, size = 0x400, scoped, tag = 'output window, operand 2, single buffered']
    #allocation11 [shape = 'u8[512]{0}', space=vmem, size = 0x400, scoped, tag = 'output window, operand 3, single buffered']
    #allocation12 [shape = 's32[1]{0}', space=sflag, size = 0x4, scoped, tag = 'scoped memory for tpu_custom_call.1']
    %12 = vsyncpa [#allocation7], 0
    %13 = vsyncpa [#allocation9], 0
    %14 = vsyncpa [#allocation12], 0
    // Predicated region
    $region2: #{tpu_custom_call.1} parent=1 // pred_check
      _
    $region3: #{tpu_custom_call.1} parent=1 // pred_check_branch
      %16 = sbr.rel (0) target = $region5
    $region4: #{tpu_custom_call.1} parent=1 // pred_region
      _
    $region5: #{tpu_custom_call.1} parent=1 // pred_fallthru
      _
    // Predicated region
    $region6: #{tpu_custom_call.1} parent=1 // pred_check
      _
    $region7: #{tpu_custom_call.1} parent=1 // pred_check_branch
      %18 = sbr.rel (0) target = $region9
    $region8: #{tpu_custom_call.1} parent=1 // pred_region
      _
    $region9: #{tpu_custom_call.1} parent=1 // pred_fallthru
      _
    // Predicated region
    $region10: #{tpu_custom_call.1} parent=1 // pred_check
      _
    $region11: #{tpu_custom_call.1} parent=1 // pred_check_branch
      %20 = sbr.rel (0) target = $region13
    $region12: #{tpu_custom_call.1} parent=1 // pred_region
      _
    $region13: #{tpu_custom_call.1} parent=1 // pred_fallthru
      _
    %p23 = scmp.eq.s32.totalorder 0, 0
    // Predicated region
    $region14: #{tpu_custom_call.1} parent=1 // pred_check
      %p24 = pneg %p23
    $region15: #{tpu_custom_call.1} parent=1 // pred_check_branch
      %26 = sbr.rel (%p24) target = $region17
    $region16: #{tpu_custom_call.1} parent=1 // pred_region
      %v27 = vld [vmem:[%s2] sm:$0xff]
      %v28 = vmul.f32 %v27, %v27
      %vm29 = vcmask 31744
      %v30 = vsel %vm29, %v28, 0.0
      %31 = vadd.xlane.f32.xlu0 %v30
      %v32 = vpop.xlane.xlu0 %31
      %v33 = vrsqrt.pop %v32
      %v34 = vmul.f32 %v32, %v33
      %vm35 = vcmp.eq.f32.partialorder %v32, inf
      %v36 = vsel %vm35, %v32, %v34
      %vm37 = vcmp.eq.f32.partialorder %v32, 0.0
      %v38 = vand.u32 %v32, 2147483648
      %v39 = vsel %vm37, %v38, %v36
      %v40 = vrcp.pop %v39
      %v41 = vmul.f32 1.5, %v40
      %v42 = vmul.f32 %v27, %v41
      %v43 = vmul.f32 %v42, %v42
      %v44 = vsel %vm29, %v43, 0.0
      %45 = vadd.xlane.f32.xlu0 %v44
      %v46 = vpop.xlane.xlu0 %45
      %v47 = vrsqrt.pop %v46
      %v48 = vmul.f32 %v46, %v47
      %vm49 = vcmp.eq.f32.partialorder %v46, inf
      %v50 = vsel %vm49, %v46, %v48
      %vm51 = vcmp.eq.f32.partialorder %v46, 0.0
      %v52 = vand.u32 %v46, 2147483648
      %v53 = vsel %vm51, %v52, %v50
      %v54 = vmax.f32 %v53, 0.0001
      %v55 = vrcp.pop %v54
      %v56 = vmul.f32 %v42, %v55
      %v57 = vld [vmem:[%s1] sm:$0xff]
      %v58 = vld [vmem:[%s1 + $0x8] sm:$0xff]
      %v59 = vld [vmem:[%s1 + $0x10] sm:$0xff]
      %v60 = vld [vmem:[%s1 + $0x18] sm:$0xff]
      %v62 = vsel %vm29, %v57, 0
      %v65 = vsel %vm29, %v58, 0
      %v68 = vsel %vm29, %v59, 0
      %v71 = vsel %vm29, %v60, 0
      %v74 = vsel %vm29, %v56, 0
      %76 = vmatprep.subr.mxu0 0.0
      %77 = vmatpush1.xpose.msra.mxu0 %v74
      %78 = vmatprep.subr.mxu0 0.0
      %79 = vmatpush1.xpose.msra.mxu0 0.0
      %80 = vmatprep.subr.mxu0 0.0
      %81 = vmatpush1.xpose.msra.mxu0 0.0
      %82 = vmatprep.subr.mxu0 0.0
      %83 = vmatpush1.xpose.msra.mxu0 0.0
      %84 = vmatprep.subr.mxu0 0.0
      %85 = vmatpush1.xpose.msra.mxu0 0.0
      %86 = vmatprep.subr.mxu0 0.0
      %87 = vmatpush1.xpose.msra.mxu0 0.0
      %88 = vmatprep.subr.mxu0 0.0
      %89 = vmatpush1.xpose.msra.mxu0 0.0
      %90 = vmatprep.subr.mxu0 0.0
      %91 = vmatpush1.xpose.msra.mxu0 0.0
      %92 = vmatprep.subr.mxu0 0.0
      %93 = vmatpush1.xpose.msra.mxu0 0.0
      %94 = vmatprep.subr.mxu0 0.0
      %95 = vmatpush1.xpose.msra.mxu0 0.0
      %96 = vmatprep.subr.mxu0 0.0
      %97 = vmatpush1.xpose.msra.mxu0 0.0
      %98 = vmatprep.subr.mxu0 0.0
      %99 = vmatpush1.xpose.msra.mxu0 0.0
      %100 = vmatprep.subr.mxu0 0.0
      %101 = vmatpush1.xpose.msra.mxu0 0.0
      %102 = vmatprep.subr.mxu0 0.0
      %103 = vmatpush1.xpose.msra.mxu0 0.0
      %104 = vmatprep.subr.mxu0 0.0
      %105 = vmatpush1.xpose.msra.mxu0 0.0
      %106 = vmatprep.subr.mxu0 0.0
      %107 = vmatpush1.xpose.msra.mxu0 0.0
      %108 = vmatprep.subr.mxu0 0.0
      %109 = vmatpush1.xpose.msra.mxu0 0.0
      %110 = vmatprep.subr.mxu0 0.0
      %111 = vmatpush1.xpose.msra.mxu0 0.0
      %112 = vmatprep.subr.mxu0 0.0
      %113 = vmatpush1.xpose.msra.mxu0 0.0
      %114 = vmatprep.subr.mxu0 0.0
      %115 = vmatpush1.xpose.msra.mxu0 0.0
      %116 = vmatprep.subr.mxu0 0.0
      %117 = vmatpush1.xpose.msra.mxu0 0.0
      %118 = vmatprep.subr.mxu0 0.0
      %119 = vmatpush1.xpose.msra.mxu0 0.0
      %120 = vmatprep.subr.mxu0 0.0
      %121 = vmatpush1.xpose.msra.mxu0 0.0
      %122 = vmatprep.subr.mxu0 0.0
      %123 = vmatpush1.xpose.msra.mxu0 0.0
      %124 = vmatprep.subr.mxu0 0.0
      %125 = vmatpush1.xpose.msra.mxu0 0.0
      %126 = vmatprep.subr.mxu0 0.0
      %127 = vmatpush1.xpose.msra.mxu0 0.0
      %128 = vmatprep.subr.mxu0 0.0
      %129 = vmatpush1.xpose.msra.mxu0 0.0
      %130 = vmatprep.subr.mxu0 0.0
      %131 = vmatpush1.xpose.msra.mxu0 0.0
      %132 = vmatprep.subr.mxu0 0.0
      %133 = vmatpush1.xpose.msra.mxu0 0.0
      %134 = vmatprep.subr.mxu0 0.0
      %135 = vmatpush1.xpose.msra.mxu0 0.0
      %136 = vmatprep.subr.mxu0 0.0
      %137 = vmatpush1.xpose.msra.mxu0 0.0
      %138 = vmatprep.subr.mxu0 0.0
      %139 = vmatpush1.xpose.msra.mxu0 0.0
      %140 = vmatprep.mubr.f32.mxu0 0.0
      %141 = vmatmul.mubr.f32.gmra.mrb[0].mxu0 %v62
      %v142 = vpop.f32.mrb[0].mxu0
      %v143 = vadd.f32 0.0, %v142
      %v144 = vpop.f32.mrb[0].mxu0
      %145 = vmatprep.mubr.f32.mxu0 0.0
      %146 = vmatmul.mubr.f32.gmra.mrb[0].mxu0 %v65
      %v147 = vpop.f32.mrb[0].mxu0
      %v148 = vadd.f32 0.0, %v147
      %v149 = vpop.f32.mrb[0].mxu0
      %150 = vmatprep.mubr.f32.mxu0 0.0
      %151 = vmatmul.mubr.f32.gmra.mrb[0].mxu0 %v68
      %v152 = vpop.f32.mrb[0].mxu0
      %v153 = vadd.f32 0.0, %v152
      %v154 = vpop.f32.mrb[0].mxu0
      %155 = vmatprep.mubr.f32.mxu0 0.0
      %156 = vmatmul.mubr.f32.gmra.mrb[0].mxu0 %v71
      %v157 = vpop.f32.mrb[0].mxu0
      %v158 = vadd.f32 0.0, %v157
      %v159 = vpop.f32.mrb[0].mxu0
      %160 = vdwg.mxu0
      %vm161 = vcmask 64512
      %162 = vst.msk [vmem:[#allocation2] sm:$0xff] %vm161, %v143
      %163 = vst.msk [vmem:[#allocation2 + $0x8] sm:$0xff] %vm161, %v148
      %164 = vst.msk [vmem:[#allocation2 + $0x10] sm:$0xff] %vm161, %v153
      %165 = vst.msk [vmem:[#allocation2 + $0x18] sm:$0xff] %vm161, %v158
      %vm166 = vcmask 57344
      %167 = vst.msk [vmem:[#allocation3] sm:$0x1] %vm166, 0.0
      %168 = vst.msk [vmem:[#allocation4] sm:$0x1] %vm166, 0.0
      %v169 = vlaneseq
      %v170 = vshrl.u32 %v169, 7
      %v171 = vlaneseq
      %v172 = vand.u32 %v171, 127
      %vm173 = vcmp.le.s32.totalorder %v172, %v170
      %v174 = vsel %vm173, 1, 0
      %v175 = vcvt.s32.f32 %v174
      %176 = vst.msk [vmem:[#allocation5] sm:$0xff] %vm161, %v175
    $region17: #{tpu_custom_call.1} parent=1 // pred_fallthru
      _
    %v177 = vld [vmem:[%s0] sm:$0xff]
    %v178 = vld [vmem:[#allocation2] sm:$0xff]
    %v179 = vld [vmem:[#allocation2 + $0x8] sm:$0xff]
    %v180 = vld [vmem:[#allocation2 + $0x10] sm:$0xff]
    %v181 = vld [vmem:[#allocation2 + $0x18] sm:$0xff]
    %vm182 = vcmask 261120
    %v184 = vsel %vm182, %v177, 0
    %186 = vmatprep.subr.mxu0 0.0
    %187 = vmatpush1.msra.mxu0 %v178
    %188 = vmatprep.subr.mxu0 0.0
    %189 = vmatpush1.msra.mxu0 %v179
    %190 = vmatprep.subr.mxu0 0.0
    %191 = vmatpush1.msra.mxu0 %v180
    %192 = vmatprep.subr.mxu0 0.0
    %193 = vmatpush1.msra.mxu0 %v181
    %194 = vmatprep.subr.mxu0 0.0
    %195 = vmatpush1.msra.mxu0 0.0
    %196 = vmatprep.subr.mxu0 0.0
    %197 = vmatpush1.msra.mxu0 0.0
    %198 = vmatprep.subr.mxu0 0.0
    %199 = vmatpush1.msra.mxu0 0.0
    %200 = vmatprep.subr.mxu0 0.0
    %201 = vmatpush1.msra.mxu0 0.0
    %202 = vmatprep.subr.mxu0 0.0
    %203 = vmatpush1.msra.mxu0 0.0
    %204 = vmatprep.subr.mxu0 0.0
    %205 = vmatpush1.msra.mxu0 0.0
    %206 = vmatprep.subr.mxu0 0.0
    %207 = vmatpush1.msra.mxu0 0.0
    %208 = vmatprep.subr.mxu0 0.0
    %209 = vmatpush1.msra.mxu0 0.0
    %210 = vmatprep.subr.mxu0 0.0
    %211 = vmatpush1.msra.mxu0 0.0
    %212 = vmatprep.subr.mxu0 0.0
    %213 = vmatpush1.msra.mxu0 0.0
    %214 = vmatprep.subr.mxu0 0.0
    %215 = vmatpush1.msra.mxu0 0.0
    %216 = vmatprep.subr.mxu0 0.0
    %217 = vmatpush1.msra.mxu0 0.0
    %218 = vmatprep.subr.mxu0 0.0
    %219 = vmatpush1.msra.mxu0 0.0
    %220 = vmatprep.subr.mxu0 0.0
    %221 = vmatpush1.msra.mxu0 0.0
    %222 = vmatprep.subr.mxu0 0.0
    %223 = vmatpush1.msra.mxu0 0.0
    %224 = vmatprep.subr.mxu0 0.0
    %225 = vmatpush1.msra.mxu0 0.0
    %226 = vmatprep.subr.mxu0 0.0
    %227 = vmatpush1.msra.mxu0 0.0
    %228 = vmatprep.subr.mxu0 0.0
    %229 = vmatpush1.msra.mxu0 0.0
    %230 = vmatprep.subr.mxu0 0.0
    %231 = vmatpush1.msra.mxu0 0.0
    %232 = vmatprep.subr.mxu0 0.0
    %233 = vmatpush1.msra.mxu0 0.0
    %234 = vmatprep.subr.mxu0 0.0
    %235 = vmatpush1.msra.mxu0 0.0
    %236 = vmatprep.subr.mxu0 0.0
    %237 = vmatpush1.msra.mxu0 0.0
    %238 = vmatprep.subr.mxu0 0.0
    %239 = vmatpush1.msra.mxu0 0.0
    %240 = vmatprep.subr.mxu0 0.0
    %241 = vmatpush1.msra.mxu0 0.0
    %242 = vmatprep.subr.mxu0 0.0
    %243 = vmatpush1.msra.mxu0 0.0
    %244 = vmatprep.subr.mxu0 0.0
    %245 = vmatpush1.msra.mxu0 0.0
    %246 = vmatprep.subr.mxu0 0.0
    %247 = vmatpush1.msra.mxu0 0.0
    %248 = vmatprep.subr.mxu0 0.0
    %249 = vmatpush1.msra.mxu0 0.0
    %250 = vmatprep.mubr.f32.mxu0 0.0
    %251 = vmatmul.mubr.f32.gmra.mrb[0].mxu0 %v184
    %v252 = vpop.f32.mrb[0].mxu0
    %v253 = vadd.f32 0.0, %v252
    %v254 = vpop.f32.mrb[0].mxu0
    %255 = vdwg.mxu0
    %v256 = vand.u32 2147483647, %v253
    %vm257 = vcmp.le.f32.partialorder %v256, 3.4028235e+38
    %v258 = vsel %vm257, %v253, -1e+30
    %vm259 = vcmask 64512
    %v260 = vsel %vm259, %v258, -inf
    %261 = vmax.xlane.f32.xlu0 %v260
    %v262 = vpop.xlane.xlu0 %261
    %v263 = vsub.f32 %v258, %v262
    %v264 = vmul.f32 %v263, 1.442695
    %v265 = vpow.pop %v264
    %v266 = vsel %vm259, %v265, 0.0
    %267 = vadd.xlane.f32.xlu0 %v266
    %v268 = vpop.xlane.xlu0 %267
    %v269 = vrcp.pop %v268
    %v270 = vmul.f32 %v265, %v269
    %v271 = vlaneseq
    %v272 = vand.u32 %v271, 127
    %vm273 = vcmp.eq.f32.partialorder %v258, %v262
    %v274 = vsel %vm273, %v272, 8
    %v275 = vsel %vm259, %v274, 2147483647
    %v276 = vand.u32 %v275, 65535
    %v277 = vshra.s32 %v275, 16
    %v278 = vcvt.s32.f32 %v276
    %v279 = vcvt.s32.f32 %v277
    %280 = vmin.xlane.f32.xlu0 %v279
    %v281 = vpop.xlane.xlu0 %280
    %vm282 = vcmp.eq.f32.partialorder %v279, %v281
    %v283 = vsel %vm282, %v278, inf
    %284 = vmin.xlane.f32.xlu0 %v283
    %v285 = vpop.xlane.xlu0 %284
    %v286 = vcvt.f32.s32 %v285
    %v287 = vcvt.f32.s32 %v281
    %v288 = vshll.u32 %v287, 16
    %v289 = vadd.s32 %v288, %v286
    %vm290 = vcmp.eq.s32.totalorder %v272, %v289
    %v291 = vsel %vm290, 1, 0
    %v292 = vcvt.s32.f32 %v291
    %v293 = vld [vmem:[#allocation5] sm:$0xff]
    %v294 = vld [vmem:[#allocation3] sm:$0x1]
    %v296 = vlaneseq
    %v297 = vshrl.u32 %v296, 7
    %v298 = vsub.s32 0, %v297
    %v299 = vrot.slane %v294, %v298
    %v302 = vsel %vm259, %v293, 0
    %304 = vmatprep.subr.mxu0 0.0
    %305 = vmatpush1.msra.mxu0 %v292
    %306 = vmatprep.subr.mxu0 0.0
    %307 = vmatpush1.msra.mxu0 0.0
    %308 = vmatprep.subr.mxu0 0.0
    %309 = vmatpush1.msra.mxu0 0.0
    %310 = vmatprep.subr.mxu0 0.0
    %311 = vmatpush1.msra.mxu0 0.0
    %312 = vmatprep.subr.mxu0 0.0
    %313 = vmatpush1.msra.mxu0 0.0
    %314 = vmatprep.subr.mxu0 0.0
    %315 = vmatpush1.msra.mxu0 0.0
    %316 = vmatprep.subr.mxu0 0.0
    %317 = vmatpush1.msra.mxu0 0.0
    %318 = vmatprep.subr.mxu0 0.0
    %319 = vmatpush1.msra.mxu0 0.0
    %320 = vmatprep.subr.mxu0 0.0
    %321 = vmatpush1.msra.mxu0 0.0
    %322 = vmatprep.subr.mxu0 0.0
    %323 = vmatpush1.msra.mxu0 0.0
    %324 = vmatprep.subr.mxu0 0.0
    %325 = vmatpush1.msra.mxu0 0.0
    %326 = vmatprep.subr.mxu0 0.0
    %327 = vmatpush1.msra.mxu0 0.0
    %328 = vmatprep.subr.mxu0 0.0
    %329 = vmatpush1.msra.mxu0 0.0
    %330 = vmatprep.subr.mxu0 0.0
    %331 = vmatpush1.msra.mxu0 0.0
    %332 = vmatprep.subr.mxu0 0.0
    %333 = vmatpush1.msra.mxu0 0.0
    %334 = vmatprep.subr.mxu0 0.0
    %335 = vmatpush1.msra.mxu0 0.0
    %336 = vmatprep.subr.mxu0 0.0
    %337 = vmatpush1.msra.mxu0 0.0
    %338 = vmatprep.subr.mxu0 0.0
    %339 = vmatpush1.msra.mxu0 0.0
    %340 = vmatprep.subr.mxu0 0.0
    %341 = vmatpush1.msra.mxu0 0.0
    %342 = vmatprep.subr.mxu0 0.0
    %343 = vmatpush1.msra.mxu0 0.0
    %344 = vmatprep.subr.mxu0 0.0
    %345 = vmatpush1.msra.mxu0 0.0
    %346 = vmatprep.subr.mxu0 0.0
    %347 = vmatpush1.msra.mxu0 0.0
    %348 = vmatprep.subr.mxu0 0.0
    %349 = vmatpush1.msra.mxu0 0.0
    %350 = vmatprep.subr.mxu0 0.0
    %351 = vmatpush1.msra.mxu0 0.0
    %352 = vmatprep.subr.mxu0 0.0
    %353 = vmatpush1.msra.mxu0 0.0
    %354 = vmatprep.subr.mxu0 0.0
    %355 = vmatpush1.msra.mxu0 0.0
    %356 = vmatprep.subr.mxu0 0.0
    %357 = vmatpush1.msra.mxu0 0.0
    %358 = vmatprep.subr.mxu0 0.0
    %359 = vmatpush1.msra.mxu0 0.0
    %360 = vmatprep.subr.mxu0 0.0
    %361 = vmatpush1.msra.mxu0 0.0
    %362 = vmatprep.subr.mxu0 0.0
    %363 = vmatpush1.msra.mxu0 0.0
    %364 = vmatprep.subr.mxu0 0.0
    %365 = vmatpush1.msra.mxu0 0.0
    %366 = vmatprep.subr.mxu0 0.0
    %367 = vmatpush1.msra.mxu0 0.0
    %368 = vmatprep.mubr.f32.mxu0 0.0
    %369 = vmatmul.mubr.f32.gmra.mrb[0].mxu0 %v302
    %v370 = vpop.f32.mrb[0].mxu0
    %v371 = vadd.f32 %v299, %v370
    %v372 = vpop.f32.mrb[0].mxu0
    %373 = vdwg.mxu0
    %v374 = vsub.f32 %v371, 1.0
    %v375 = vsel %vm259, %v292, 0.0
    %v376 = vrot.slane %v375, 4
    %v377 = vadd.f32 %v375, %v376
    %v378 = vrot.slane %v377, 2
    %v379 = vadd.f32 %v377, %v378
    %v380 = vrot.slane %v379, 1
    %v381 = vadd.f32 %v379, %v380
    %v382 = vadd.f32 %v294, %v381
    %vm383 = vcmask 57344
    %384 = vst.msk [vmem:[#allocation3] sm:$0x1] %vm383, %v382
    %v385 = vld [vmem:[#allocation4] sm:$0x1]
    %v386 = vsel %vm259, %v270, 0.0
    %v387 = vrot.slane %v386, 4
    %v388 = vadd.f32 %v386, %v387
    %v389 = vrot.slane %v388, 2
    %v390 = vadd.f32 %v388, %v389
    %v391 = vrot.slane %v390, 1
    %v392 = vadd.f32 %v390, %v391
    %v393 = vadd.f32 %v385, %v392
    %394 = vst.msk [vmem:[#allocation4] sm:$0x1] %vm383, %v393
    %v395 = vmul.f32 %v270, %v292
    %v396 = vsel %vm259, %v395, 0.0
    %397 = vadd.xlane.f32.xlu0 %v396
    %v398 = vpop.xlane.xlu0 %397
    %v399 = vmul.f32 %v398, 1.5
    %v400 = vmul.f32 %v374, %v292
    %v401 = vsel %vm259, %v400, 0.0
    %402 = vadd.xlane.f32.xlu0 %v401
    %v403 = vpop.xlane.xlu0 %402
    %vm404 = vcmp.lt.f32.partialorder %v403, 8.0
    %v405 = vmul.u32 %v289, 8
    %v406 = vcvt.f32.s32.to.zero.pseudo %v403
    %v407 = vadd.s32 %v405, %v406
    %vm408 = vcmp.eq.s32.totalorder %v272, %v407
    %v409 = vsel %vm404, 1, 0
    %vm410 = vcmp.eq.s32.totalorder %v409, 1
    %vm411 = vmand %vm408, %vm410
    %v412 = vsel %vm411, %v399, 0.0
    %vm413 = vcmask 523264
    %414 = vst.msk [vmem:[#allocation6] sm:$0xff] %vm413, %v412
    %vm415 = vcmp.ne.f32.partialorder %v412, 0.0
    %vm416 = vmpackc.low %vm415, %vm415
    %vm417 = vmpackc.even %vm416, %vm416
    %v418 = vsel %vm417, 16843009, 0
    %vm419 = vcmask 517120
    %420 = vst.msk [vmem:[#allocation8] sm:$0x3] %vm419, %v418
    // Predicated region
    $region18: #{tpu_custom_call.1} parent=1 // pred_check
      %p421 = pneg %p23
    $region19: #{tpu_custom_call.1} parent=1 // pred_check_branch
      %423 = sbr.rel (%p421) target = $region21
    $region20: #{tpu_custom_call.1} parent=1 // pred_region
      %v424 = vld [vmem:[#allocation3] sm:$0x1]
      %v425 = vld [vmem:[#allocation4] sm:$0x1]
      %v426 = vmul.f32 %v425, 0.125
      %v427 = vmul.f32 %v424, 0.125
      %v428 = vmul.f32 %v426, %v427
      %v429 = vsel %vm383, %v428, 0.0
      %430 = vadd.xlane.f32.xlu0 %v429
      %v431 = vpop.xlane.xlu0 %430
      %v432 = vrot.slane %v431, 4
      %v433 = vadd.f32 %v431, %v432
      %v434 = vrot.slane %v433, 2
      %v435 = vadd.f32 %v433, %v434
      %v436 = vrot.slane %v435, 1
      %v437 = vadd.f32 %v435, %v436
      %s438 = vtos %v437
      %v439 = vstv %s438
      %v440 = vmul.f32 %v439, 8.0
      %vm441 = vcmask 0
      %442 = vst.msk [vmem:[#allocation10] sm:$0x1] %vm441, %v440
      %v443 = vcvt.f32.s32.to.zero.pseudo %v424
      %444 = vst.msk [vmem:[#allocation11] sm:$0x1] %vm383, %v443
    $region21: #{tpu_custom_call.1} parent=1 // pred_fallthru
      _
    // Predicated region
    $region22: #{tpu_custom_call.1} parent=1 // pred_check
      _
    $region23: #{tpu_custom_call.1} parent=1 // pred_check_branch
      %446 = sbr.rel (0) target = $region25
    $region24: #{tpu_custom_call.1} parent=1 // pred_region
      %s448 = ssub.s32 128, 128
      %449 = vsyncadd [#allocation7], %s448
      %s451 = sshll.u32 [#allocation6], 4
      %s452 = int_to_ptr.vmem [resolvable:$true] %s451
      %454 = dma.vmem_to_hbm [thread:$0]  %s452, 128, %s3, [#allocation7]
    $region25: #{tpu_custom_call.1} parent=1 // pred_fallthru
      _
    // Predicated region
    $region26: #{tpu_custom_call.1} parent=1 // pred_check
      _
    $region27: #{tpu_custom_call.1} parent=1 // pred_check_branch
      %456 = sbr.rel (0) target = $region29
    $region28: #{tpu_custom_call.1} parent=1 // pred_region
      %s458 = ssub.s32 32, 32
      %459 = vsyncadd [#allocation9], %s458
      %s461 = sshll.u32 [#allocation8], 4
      %s462 = int_to_ptr.vmem [resolvable:$true] %s461
      %464 = dma.vmem_to_hbm [thread:$0]  %s462, 32, %s4, [#allocation9]
    $region29: #{tpu_custom_call.1} parent=1 // pred_fallthru
      _
    // Predicated region
    $region30: #{tpu_custom_call.1} parent=1 // pred_check
      _
    $region31: #{tpu_custom_call.1} parent=1 // pred_check_branch
      %466 = sbr.rel (0) target = $region33
    $region32: #{tpu_custom_call.1} parent=1 // pred_region
      %s468 = ssub.s32 16, 16
      %469 = vsyncadd [#allocation9], %s468
      %s471 = sshll.u32 [#allocation10], 4
      %s472 = int_to_ptr.vmem [resolvable:$true] %s471
      %474 = dma.vmem_to_hbm [thread:$0]  %s472, 16, %s5, [#allocation9]
    $region33: #{tpu_custom_call.1} parent=1 // pred_fallthru
      _
    // Predicated region
    $region34: #{tpu_custom_call.1} parent=1 // pred_check
      _
    $region35: #{tpu_custom_call.1} parent=1 // pred_check_branch
      %476 = sbr.rel (0) target = $region37
    $region36: #{tpu_custom_call.1} parent=1 // pred_region
      %s478 = ssub.s32 16, 16
      %479 = vsyncadd [#allocation12], %s478
      %s481 = sshll.u32 [#allocation11], 4
      %s482 = int_to_ptr.vmem [resolvable:$true] %s481
      %484 = dma.vmem_to_hbm [thread:$0]  %s482, 16, %s6, [#allocation12]
    $region37: #{tpu_custom_call.1} parent=1 // pred_fallthru
      _
    // Predicated region
    $region38: #{tpu_custom_call.1} parent=1 // pred_check
      _
    $region39: #{tpu_custom_call.1} parent=1 // pred_check_branch
      %486 = sbr.rel (0) target = $region41
    $region40: #{tpu_custom_call.1} parent=1 // pred_region
      %487 = dma.done [#allocation7], 128
    $region41: #{tpu_custom_call.1} parent=1 // pred_fallthru
      _
    // Predicated region
    $region42: #{tpu_custom_call.1} parent=1 // pred_check
      _
    $region43: #{tpu_custom_call.1} parent=1 // pred_check_branch
      %489 = sbr.rel (0) target = $region45
    $region44: #{tpu_custom_call.1} parent=1 // pred_region
      %490 = dma.done [#allocation9], 32
    $region45: #{tpu_custom_call.1} parent=1 // pred_fallthru
      _
    // Predicated region
    $region46: #{tpu_custom_call.1} parent=1 // pred_check
      _
    $region47: #{tpu_custom_call.1} parent=1 // pred_check_branch
      %492 = sbr.rel (0) target = $region49
    $region48: #{tpu_custom_call.1} parent=1 // pred_region
      %493 = dma.done [#allocation9], 16
    $region49: #{tpu_custom_call.1} parent=1 // pred_fallthru
      _
    // Predicated region
    $region50: #{tpu_custom_call.1} parent=1 // pred_check
      _
    $region51: #{tpu_custom_call.1} parent=1 // pred_check_branch
      %495 = sbr.rel (0) target = $region53
    $region52: #{tpu_custom_call.1} parent=1 // pred_region
      %496 = dma.done [#allocation12], 16
    $region53: #{tpu_custom_call.1} parent=1 // pred_fallthru
      _
    %497 = vsyncpa [#allocation7], 1
    %498 = vsyncpa [#allocation9], 1
    %499 = vsyncpa [#allocation12], 1

</llo_original>
